<compile_context>
chip_gen: v7x
topology: tpu7x:2x2x1
jax: 0.10.0
libtpu: 0.0.40
codegen_flags: <defaults>
</compile_context>

<pallas_src>
import functools

import jax
import jax.numpy as jnp
from jax.experimental import pallas as pl
from jax.experimental.pallas import tpu as pltpu


_ROW_ALIGN = 8
_COL_ALIGN = 128
_BR_MAX = 256      # rows per block (multiple of 8)
_BC_MAX = 2048     # cols per block (multiple of 128) -> <= 2 MiB f32 per input tile


def _round_up(x, m):
    return ((x + m - 1) // m) * m


def _cdiv(a, b):
    return -(-a // b)


def _ipow(x, p):
    # Integer powers as multiply chains (no exp/log through the EUP).
    if p == 1:
        return x
    if p == 2:
        return x * x
    if isinstance(p, int) and p > 0:
        return jax.lax.integer_pow(x, p)
    return x ** p


def _dice_sums_kernel(p_ref, t_ref, out_ref, num_acc, den_acc, *,
                      p_exp, block_cols, valid_cols):
    """Accumulate elementwise partial sums of sigmoid(x)*t and sigmoid(x)^p + t^p.

    num_acc / den_acc: (br, 128) f32 scratch with per-lane partial sums; the
    final 128-lane reduction is done on the host so the hot loop stays pure
    VPU/EUP work (no per-step XLU reduce).
    """
    j = pl.program_id(1)

    @pl.when(j == 0)
    def _():
        num_acc[...] = jnp.zeros_like(num_acc)
        den_acc[...] = jnp.zeros_like(den_acc)

    n_strips = block_cols // 128
    # Static: tail-column masking only needed if spatial was zero-padded.
    need_mask = (valid_cols % block_cols) != 0
    col_base = j * block_cols

    for k in range(n_strips):
        sl = slice(k * 128, (k + 1) * 128)
        pred = jax.nn.sigmoid(p_ref[:, sl].astype(jnp.float32))
        tgt = t_ref[:, sl].astype(jnp.float32)
        if need_mask:
            lane = jax.lax.broadcasted_iota(jnp.int32, pred.shape, 1)
            valid = (col_base + k * 128 + lane) < valid_cols
            pred = jnp.where(valid, pred, 0.0)
            tgt = jnp.where(valid, tgt, 0.0)
        num_acc[...] += pred * tgt
        den_acc[...] += _ipow(pred, p_exp) + _ipow(tgt, p_exp)

    @pl.when(j == pl.num_programs(1) - 1)
    def _():
        out_ref[:, 0:128] = num_acc[...]
        out_ref[:, 128:256] = den_acc[...]


def _choose_row_block(rows_p):
    cap = min(_BR_MAX, rows_p)
    if rows_p >= 2 * _ROW_ALIGN:
        # Keep >= 2 row blocks so the 'parallel' axis can shard across the
        # two TensorCores of a v7x chip.
        cap = min(cap, (rows_p // 2) // _ROW_ALIGN * _ROW_ALIGN)
    for cand in range(cap, _ROW_ALIGN - 1, -_ROW_ALIGN):
        if rows_p % cand == 0:
            return cand
    return _ROW_ALIGN


def _choose_col_block(cols):
    if cols % _COL_ALIGN == 0:
        # Aligned: largest 128-multiple divisor <= _BC_MAX (no padding at all).
        for cand in range(min(_BC_MAX, cols), _COL_ALIGN - 1, -_COL_ALIGN):
            if cols % cand == 0:
                return cand, cols
        return _COL_ALIGN, cols
    # Unaligned spatial: pick the block minimizing the zero-padded remainder
    # (largest block wins ties).
    best_bc, best_padded = None, None
    max_bc = min(_BC_MAX, _round_up(cols, _COL_ALIGN))
    for cand in range(max_bc, _COL_ALIGN - 1, -_COL_ALIGN):
        padded = _cdiv(cols, cand) * cand
        if best_padded is None or padded < best_padded:
            best_bc, best_padded = cand, padded
    return best_bc, best_padded


def dice_loss(predict, target, *, weight=None, smooth=1.0, p=2, reduction="mean"):
    """Matches DiceLoss.forward semantics (NCHW inputs, sigmoid applied to predict)."""
    assert predict.shape == target.shape, "predict & target shape do not match"
    N, C = predict.shape[0], predict.shape[1]
    spatial = 1
    for d in predict.shape[2:]:
        spatial *= d

    rows = N * C
    pred2d = predict.reshape(rows, spatial)
    tgt2d = target.reshape(rows, spatial)

    rows_p = _round_up(rows, _ROW_ALIGN)
    bc, cols_p = _choose_col_block(spatial)
    br = _choose_row_block(rows_p)

    # Pad only when unavoidable (zero-pad the small remainder). Padded rows are
    # sliced away below; padded columns are masked inside the kernel.
    if rows_p != rows or cols_p != spatial:
        pad = ((0, rows_p - rows), (0, cols_p - spatial))
        pred2d = jnp.pad(pred2d, pad)
        tgt2d = jnp.pad(tgt2d, pad)

    grid = (rows_p // br, cols_p // bc)

    kernel = functools.partial(_dice_sums_kernel, p_exp=p, block_cols=bc,
                               valid_cols=spatial)
    packed = pl.pallas_call(
        kernel,
        out_shape=jax.ShapeDtypeStruct((rows_p, 256), jnp.float32),
        grid_spec=pltpu.PrefetchScalarGridSpec(
            num_scalar_prefetch=0,
            grid=grid,
            in_specs=[
                pl.BlockSpec((br, bc), lambda i, j: (i, j)),
                pl.BlockSpec((br, bc), lambda i, j: (i, j)),
            ],
            out_specs=pl.BlockSpec((br, 256), lambda i, j: (i, 0)),
            scratch_shapes=[
                pltpu.VMEM((br, 128), jnp.float32),
                pltpu.VMEM((br, 128), jnp.float32),
            ],
        ),
        compiler_params=pltpu.CompilerParams(
            dimension_semantics=("parallel", "arbitrary"),
            vmem_limit_bytes=32 * 1024 * 1024,
        ),
    )(pred2d, tgt2d)

    # Tiny host-side finish: final 128-lane reduce of the packed partial sums.
    num_sums = jnp.sum(packed[:rows, 0:128], axis=1).reshape(N, C)
    den_sums = jnp.sum(packed[:rows, 128:256], axis=1).reshape(N, C)

    loss_nc = 1.0 - (num_sums + smooth) / (den_sums + smooth)  # [N, C]

    if reduction == "mean":
        per_class = jnp.mean(loss_nc, axis=0)          # [C]
    elif reduction == "sum":
        per_class = jnp.sum(loss_nc, axis=0)           # [C]
    elif reduction == "none":
        per_class = loss_nc.T                          # [C, N]
    else:
        raise Exception("Unexpected reduction {}".format(reduction))

    if weight is not None:
        assert weight.shape[0] == C
        if reduction == "none":
            per_class = per_class * weight[:, None]
        else:
            per_class = per_class * weight

    # Sum over classes and divide by C, mirroring the PyTorch DiceLoss wrapper
    # (with reduction='none' this yields a [N,] tensor, same as the PyTorch code).
    return jnp.sum(per_class, axis=0) / C


def _reference_dice_loss(predict, target, *, weight=None, smooth=1.0, p=2,
                         reduction="mean"):
    """Pure-JAX reference mirroring the PyTorch code path."""
    N, C = predict.shape[0], predict.shape[1]
    pred = jax.nn.sigmoid(predict.astype(jnp.float32))
    tgt = target.astype(jnp.float32)
    total = 0.0
    for i in range(C):
        pi = pred[:, i].reshape(N, -1)
        ti = tgt[:, i].reshape(N, -1)
        num = jnp.sum(pi * ti, axis=1) + smooth
        den = jnp.sum(pi ** p + ti ** p, axis=1) + smooth
        loss = 1.0 - num / den
        if reduction == "mean":
            loss = jnp.mean(loss)
        elif reduction == "sum":
            loss = jnp.sum(loss)
        if weight is not None:
            loss = loss * weight[i]
        total = total + loss
    return total / C


if __name__ == "__main__":
    key = jax.random.PRNGKey(0)
    k1, k2, k3, k4 = jax.random.split(key, 4)

    # Aligned case (no-host-padding fast path): N*C % 8 == 0, H*W % 128 == 0.
    N, C, H, W = 2, 4, 16, 16
    predict = jax.random.normal(k1, (N, C, H, W), dtype=jnp.float32)
    target = (jax.random.uniform(k2, (N, C, H, W)) > 0.5).astype(jnp.float32)

    out = dice_loss(predict, target, weight=None, smooth=1.0, p=2, reduction="mean")
    out = jax.block_until_ready(out)
    ref = _reference_dice_loss(predict, target, weight=None, smooth=1.0, p=2)
    assert jnp.allclose(out, ref, rtol=1e-5, atol=1e-5), (out, ref)

    # Unaligned case: exercises the in-kernel tail-column mask + row slicing.
    N2, C2, H2, W2 = 2, 3, 15, 15
    predict2 = jax.random.normal(k3, (N2, C2, H2, W2), dtype=jnp.float32)
    target2 = (jax.random.uniform(k4, (N2, C2, H2, W2)) > 0.5).astype(jnp.float32)
    out2 = jax.block_until_ready(
        dice_loss(predict2, target2, smooth=1.0, p=2, reduction="mean"))
    ref2 = _reference_dice_loss(predict2, target2, smooth=1.0, p=2)
    assert jnp.allclose(out2, ref2, rtol=1e-5, atol=1e-5), (out2, ref2)

    print("KERNEL_OK")
</pallas_src>

<mosaic_0001>
module attributes {stable_mosaic.version = 11 : i64} {
  func.func @_dice_sums_kernel(%arg0: i32, %arg1: i32, %arg2: memref<8x256xf32, #tpu.memory_space<vmem>>, %arg3: memref<8x256xf32, #tpu.memory_space<vmem>>, %arg4: memref<8x256xf32, #tpu.memory_space<vmem>>, %arg5: memref<8x128xf32, #tpu.memory_space<vmem>>, %arg6: memref<8x128xf32, #tpu.memory_space<vmem>>) attributes {dimension_semantics = [#tpu.dimension_semantics<parallel>, #tpu.dimension_semantics<arbitrary>], iteration_bounds = array<i64: 1, 1>, scalar_prefetch = 0 : i64, scratch_operands = 2 : i64, tpu.core_type = #tpu.core_type<tc>, window_params = [{transform_indices = @transform_0, window_bounds = array<i64: 8, 256>}, {transform_indices = @transform_1, window_bounds = array<i64: 8, 256>}, {transform_indices = @transform_2, window_bounds = array<i64: 8, 256>}]} {
    %c0_i32 = arith.constant 0 : i32
    %0 = arith.cmpi eq, %arg1, %c0_i32 : i32
    %1 = arith.extui %0 : i1 to i32
    %c0_i32_0 = arith.constant 0 : i32
    %2 = arith.cmpi ne, %1, %c0_i32_0 : i32
    scf.if %2 {
      %cst_26 = arith.constant 0.000000e+00 : f32
      %40 = vector.broadcast %cst_26 : f32 to vector<8x128xf32>
      %c0_27 = arith.constant 0 : index
      %c0_28 = arith.constant 0 : index
      %41 = vector.load %arg5[%c0_27, %c0_28] : memref<8x128xf32, #tpu.memory_space<vmem>>, vector<8x128xf32>
      tpu.vector_store %arg5[%c0_27, %c0_28], %40 {strides = array<i32>} : memref<8x128xf32, #tpu.memory_space<vmem>>, vector<8x128xf32>,
      %cst_29 = arith.constant 0.000000e+00 : f32
      %42 = vector.broadcast %cst_29 : f32 to vector<8x128xf32>
      %c0_30 = arith.constant 0 : index
      %c0_31 = arith.constant 0 : index
      %43 = vector.load %arg6[%c0_30, %c0_31] : memref<8x128xf32, #tpu.memory_space<vmem>>, vector<8x128xf32>
      tpu.vector_store %arg6[%c0_30, %c0_31], %42 {strides = array<i32>} : memref<8x128xf32, #tpu.memory_space<vmem>>, vector<8x128xf32>,
    } else {
    }
    %c0 = arith.constant 0 : index
    %c0_1 = arith.constant 0 : index
    %3 = vector.load %arg2[%c0, %c0_1] : memref<8x256xf32, #tpu.memory_space<vmem>>, vector<8x128xf32>
    %4 = arith.negf %3 : vector<8x128xf32>
    %5 = math.exp %4 : vector<8x128xf32>
    %cst = arith.constant 1.000000e+00 : f32
    %6 = vector.broadcast %cst : f32 to vector<8x128xf32>
    %7 = arith.addf %6, %5 : vector<8x128xf32>
    %8 = arith.divf %6, %7 : vector<8x128xf32>
    %c0_2 = arith.constant 0 : index
    %c0_3 = arith.constant 0 : index
    %9 = vector.load %arg3[%c0_2, %c0_3] : memref<8x256xf32, #tpu.memory_space<vmem>>, vector<8x128xf32>
    %c0_4 = arith.constant 0 : index
    %c0_5 = arith.constant 0 : index
    %10 = vector.load %arg5[%c0_4, %c0_5] : memref<8x128xf32, #tpu.memory_space<vmem>>, vector<8x128xf32>
    %11 = arith.mulf %8, %9 : vector<8x128xf32>
    %12 = arith.addf %10, %11 : vector<8x128xf32>
    %c0_6 = arith.constant 0 : index
    %c0_7 = arith.constant 0 : index
    %13 = vector.load %arg5[%c0_6, %c0_7] : memref<8x128xf32, #tpu.memory_space<vmem>>, vector<8x128xf32>
    tpu.vector_store %arg5[%c0_6, %c0_7], %12 {strides = array<i32>} : memref<8x128xf32, #tpu.memory_space<vmem>>, vector<8x128xf32>,
    %c0_8 = arith.constant 0 : index
    %c0_9 = arith.constant 0 : index
    %14 = vector.load %arg6[%c0_8, %c0_9] : memref<8x128xf32, #tpu.memory_space<vmem>>, vector<8x128xf32>
    %15 = arith.mulf %8, %8 : vector<8x128xf32>
    %16 = arith.mulf %9, %9 : vector<8x128xf32>
    %17 = arith.addf %15, %16 : vector<8x128xf32>
    %18 = arith.addf %14, %17 : vector<8x128xf32>
    %c0_10 = arith.constant 0 : index
    %c0_11 = arith.constant 0 : index
    %19 = vector.load %arg6[%c0_10, %c0_11] : memref<8x128xf32, #tpu.memory_space<vmem>>, vector<8x128xf32>
    tpu.vector_store %arg6[%c0_10, %c0_11], %18 {strides = array<i32>} : memref<8x128xf32, #tpu.memory_space<vmem>>, vector<8x128xf32>,
    %c0_12 = arith.constant 0 : index
    %c128 = arith.constant 128 : index
    %20 = vector.load %arg2[%c0_12, %c128] : memref<8x256xf32, #tpu.memory_space<vmem>>, vector<8x128xf32>
    %21 = arith.negf %20 : vector<8x128xf32>
    %22 = math.exp %21 : vector<8x128xf32>
    %cst_13 = arith.constant 1.000000e+00 : f32
    %23 = vector.broadcast %cst_13 : f32 to vector<8x128xf32>
    %24 = arith.addf %23, %22 : vector<8x128xf32>
    %25 = arith.divf %23, %24 : vector<8x128xf32>
    %c0_14 = arith.constant 0 : index
    %c128_15 = arith.constant 128 : index
    %26 = vector.load %arg3[%c0_14, %c128_15] : memref<8x256xf32, #tpu.memory_space<vmem>>, vector<8x128xf32>
    %c0_16 = arith.constant 0 : index
    %c0_17 = arith.constant 0 : index
    %27 = vector.load %arg5[%c0_16, %c0_17] : memref<8x128xf32, #tpu.memory_space<vmem>>, vector<8x128xf32>
    %28 = arith.mulf %25, %26 : vector<8x128xf32>
    %29 = arith.addf %27, %28 : vector<8x128xf32>
    %c0_18 = arith.constant 0 : index
    %c0_19 = arith.constant 0 : index
    %30 = vector.load %arg5[%c0_18, %c0_19] : memref<8x128xf32, #tpu.memory_space<vmem>>, vector<8x128xf32>
    tpu.vector_store %arg5[%c0_18, %c0_19], %29 {strides = array<i32>} : memref<8x128xf32, #tpu.memory_space<vmem>>, vector<8x128xf32>,
    %c0_20 = arith.constant 0 : index
    %c0_21 = arith.constant 0 : index
    %31 = vector.load %arg6[%c0_20, %c0_21] : memref<8x128xf32, #tpu.memory_space<vmem>>, vector<8x128xf32>
    %32 = arith.mulf %25, %25 : vector<8x128xf32>
    %33 = arith.mulf %26, %26 : vector<8x128xf32>
    %34 = arith.addf %32, %33 : vector<8x128xf32>
    %35 = arith.addf %31, %34 : vector<8x128xf32>
    %c0_22 = arith.constant 0 : index
    %c0_23 = arith.constant 0 : index
    %36 = vector.load %arg6[%c0_22, %c0_23] : memref<8x128xf32, #tpu.memory_space<vmem>>, vector<8x128xf32>
    tpu.vector_store %arg6[%c0_22, %c0_23], %35 {strides = array<i32>} : memref<8x128xf32, #tpu.memory_space<vmem>>, vector<8x128xf32>,
    %c0_i32_24 = arith.constant 0 : i32
    %37 = arith.cmpi eq, %arg1, %c0_i32_24 : i32
    %38 = arith.extui %37 : i1 to i32
    %c0_i32_25 = arith.constant 0 : i32
    %39 = arith.cmpi ne, %38, %c0_i32_25 : i32
    scf.if %39 {
      %c0_26 = arith.constant 0 : index
      %c0_27 = arith.constant 0 : index
      %40 = vector.load %arg5[%c0_26, %c0_27] : memref<8x128xf32, #tpu.memory_space<vmem>>, vector<8x128xf32>
      %c0_28 = arith.constant 0 : index
      %c0_29 = arith.constant 0 : index
      %41 = vector.load %arg4[%c0_28, %c0_29] : memref<8x256xf32, #tpu.memory_space<vmem>>, vector<8x128xf32>
      tpu.vector_store %arg4[%c0_28, %c0_29], %40 {strides = array<i32>} : memref<8x256xf32, #tpu.memory_space<vmem>>, vector<8x128xf32>,
      %c0_30 = arith.constant 0 : index
      %c0_31 = arith.constant 0 : index
      %42 = vector.load %arg6[%c0_30, %c0_31] : memref<8x128xf32, #tpu.memory_space<vmem>>, vector<8x128xf32>
      %c0_32 = arith.constant 0 : index
      %c128_33 = arith.constant 128 : index
      %43 = vector.load %arg4[%c0_32, %c128_33] : memref<8x256xf32, #tpu.memory_space<vmem>>, vector<8x128xf32>
      tpu.vector_store %arg4[%c0_32, %c128_33], %42 {strides = array<i32>} : memref<8x256xf32, #tpu.memory_space<vmem>>, vector<8x128xf32>,
    } else {
    }
    return
  }
  func.func @transform_0(%arg0: i32, %arg1: i32) -> (i32, i32) {
    %c0_i32 = arith.constant 0 : i32
    return %arg0, %arg1 : i32, i32
  }
  func.func @transform_1(%arg0: i32, %arg1: i32) -> (i32, i32) {
    %c0_i32 = arith.constant 0 : i32
    return %arg0, %arg1 : i32, i32
  }
  func.func @transform_2(%arg0: i32, %arg1: i32) -> (i32, i32) {
    %c0_i32 = arith.constant 0 : i32
    %c0_i32_0 = arith.constant 0 : i32
    return %arg0, %c0_i32 : i32, i32
  }
}

</mosaic_0001>

<llo_original>
// kernel: tpu_custom_call.1
$region0: #{tpu_custom_call.1}
  #allocation0 [shape = 'u32[]', space=smem, size = 0x4, offset = 0x4, fixed_abs, tag = 'smem constant byte address 0x4 - core index']
  #allocation1 [shape = 'u32[144,128]{1,0:T(1,128)}', space=vmem, size = 0x12000, scoped, tag = 'internal scratch']
  #allocation2 [shape = 'f32[8,128]{1,0:T(8,128)}', space=vmem, size = 0x1000, scoped, tag = 'scratch operand']
  #allocation3 [shape = 'f32[8,128]{1,0:T(8,128)}', space=vmem, size = 0x1000, scoped, tag = 'scratch operand']
  %s0 = inlined_call_operand.hbm [shape: f32[8,256], index: 0, kind: input, shape index: {}]
  %s1 = inlined_call_operand.hbm [shape: f32[8,256], index: 1, kind: input, shape index: {}]
  %s2 = inlined_call_operand.hbm [shape: f32[8,256], index: 2, kind: output, shape index: {}]
  %s3 = sld [smem:[#allocation0]]
  $region34: #{tpu_custom_call.1} parent=0
    _
  %s5 = ssub.s32 1, %s3
  %s6 = scalar_select 0, %s5, %s3
  $region1: #{tpu_custom_call.1} parent=0
    #allocation4 [shape = 'u8[8192]{0}', space=vmem, size = 0x2000, scoped, tag = 'input window, operand 0, single buffered']
    #allocation5 [shape = 's32[1]{0}', space=sflag, size = 0x4, scoped, tag = 'scoped memory for tpu_custom_call.1']
    #allocation6 [shape = 's32[1]{0}', space=sflag, size = 0x4, scoped, tag = 'scoped memory for tpu_custom_call.1']
    #allocation7 [shape = 'u8[8192]{0}', space=vmem, size = 0x2000, scoped, tag = 'input window, operand 1, single buffered']
    #allocation8 [shape = 's32[1]{0}', space=sflag, size = 0x4, scoped, tag = 'scoped memory for tpu_custom_call.1']
    #allocation9 [shape = 'u8[8192]{0}', space=vmem, size = 0x2000, scoped, tag = 'output window, operand 0, single buffered']
    %7 = vsyncpa [#allocation5], 0
    %8 = vsyncpa [#allocation8], 0
    %9 = vsyncpa [#allocation6], 0
    // Predicated region
    $region2: #{tpu_custom_call.1} parent=1 // pred_check
      _
    $region3: #{tpu_custom_call.1} parent=1 // pred_check_branch
      %11 = sbr.rel (0) target = $region5
    $region4: #{tpu_custom_call.1} parent=1 // pred_region
      %s13 = ssub.s32 256, 256
      %14 = vsyncadd [#allocation5], %s13
      %s16 = sshll.u32 [#allocation4], 4
      %s17 = int_to_ptr.vmem [resolvable:$true] %s16
      %19 = dma.hbm_to_vmem [thread:$0]  %s0, 256, %s17, [#allocation5]
    $region5: #{tpu_custom_call.1} parent=1 // pred_fallthru
      _
    // Predicated region
    $region6: #{tpu_custom_call.1} parent=1 // pred_check
      _
    $region7: #{tpu_custom_call.1} parent=1 // pred_check_branch
      %21 = sbr.rel (0) target = $region9
    $region8: #{tpu_custom_call.1} parent=1 // pred_region
      %s23 = ssub.s32 256, 256
      %24 = vsyncadd [#allocation8], %s23
      %s26 = sshll.u32 [#allocation7], 4
      %s27 = int_to_ptr.vmem [resolvable:$true] %s26
      %29 = dma.hbm_to_vmem [thread:$0]  %s1, 256, %s27, [#allocation8]
    $region9: #{tpu_custom_call.1} parent=1 // pred_fallthru
      _
    // Predicated region
    $region10: #{tpu_custom_call.1} parent=1 // pred_check
      _
    $region11: #{tpu_custom_call.1} parent=1 // pred_check_branch
      %31 = sbr.rel (0) target = $region13
    $region12: #{tpu_custom_call.1} parent=1 // pred_region
      %32 = dma.done [#allocation5], 256
    $region13: #{tpu_custom_call.1} parent=1 // pred_fallthru
      _
    // Predicated region
    $region14: #{tpu_custom_call.1} parent=1 // pred_check
      _
    $region15: #{tpu_custom_call.1} parent=1 // pred_check_branch
      %34 = sbr.rel (0) target = $region17
    $region16: #{tpu_custom_call.1} parent=1 // pred_region
      %35 = dma.done [#allocation8], 256
    $region17: #{tpu_custom_call.1} parent=1 // pred_fallthru
      _
    %p36 = scmp.eq.s32.totalorder 0, 0
    // Predicated region
    $region18: #{tpu_custom_call.1} parent=1 // pred_check
      %p37 = pneg %p36
    $region19: #{tpu_custom_call.1} parent=1 // pred_check_branch
      %39 = sbr.rel (%p37) target = $region21
    $region20: #{tpu_custom_call.1} parent=1 // pred_region
      %40 = vst [vmem:[#allocation2] sm:$0xff] 0.0
      %41 = vst [vmem:[#allocation3] sm:$0xff] 0.0
    $region21: #{tpu_custom_call.1} parent=1 // pred_fallthru
      _
    %v42 = vld [vmem:[#allocation4] sm:$0xff]
    %v43 = vxor.u32 %v42, 2147483648
    %v44 = vmul.f32 %v43, 1.442695
    %v45 = vpow.pop %v44
    %v46 = vadd.f32 %v45, 1.0
    %v47 = vrcp.pop %v46
    %v48 = vmul.f32 1.0, %v47
    %v49 = vld [vmem:[#allocation7] sm:$0xff]
    %v50 = vld [vmem:[#allocation2] sm:$0xff]
    %v51 = vmul.f32 %v48, %v49
    %v52 = vadd.f32 %v50, %v51
    %53 = vst [vmem:[#allocation2] sm:$0xff] %v52
    %v54 = vld [vmem:[#allocation3] sm:$0xff]
    %v55 = vmul.f32 %v48, %v48
    %v56 = vmul.f32 %v49, %v49
    %v57 = vadd.f32 %v55, %v56
    %v58 = vadd.f32 %v54, %v57
    %59 = vst [vmem:[#allocation3] sm:$0xff] %v58
    %v60 = vld [vmem:[#allocation4 + $0x8] sm:$0xff]
    %v61 = vxor.u32 %v60, 2147483648
    %v62 = vmul.f32 %v61, 1.442695
    %v63 = vpow.pop %v62
    %v64 = vadd.f32 %v63, 1.0
    %v65 = vrcp.pop %v64
    %v66 = vmul.f32 1.0, %v65
    %v67 = vld [vmem:[#allocation7 + $0x8] sm:$0xff]
    %v68 = vld [vmem:[#allocation2] sm:$0xff]
    %v69 = vmul.f32 %v66, %v67
    %v70 = vadd.f32 %v68, %v69
    %71 = vst [vmem:[#allocation2] sm:$0xff] %v70
    %v72 = vld [vmem:[#allocation3] sm:$0xff]
    %v73 = vmul.f32 %v66, %v66
    %v74 = vmul.f32 %v67, %v67
    %v75 = vadd.f32 %v73, %v74
    %v76 = vadd.f32 %v72, %v75
    %77 = vst [vmem:[#allocation3] sm:$0xff] %v76
    // Predicated region
    $region22: #{tpu_custom_call.1} parent=1 // pred_check
      %p78 = pneg %p36
    $region23: #{tpu_custom_call.1} parent=1 // pred_check_branch
      %80 = sbr.rel (%p78) target = $region25
    $region24: #{tpu_custom_call.1} parent=1 // pred_region
      %v81 = vld [vmem:[#allocation2] sm:$0xff]
      %82 = vst [vmem:[#allocation9] sm:$0xff] %v81
      %v83 = vld [vmem:[#allocation3] sm:$0xff]
      %84 = vst [vmem:[#allocation9 + $0x8] sm:$0xff] %v83
    $region25: #{tpu_custom_call.1} parent=1 // pred_fallthru
      _
    // Predicated region
    $region26: #{tpu_custom_call.1} parent=1 // pred_check
      _
    $region27: #{tpu_custom_call.1} parent=1 // pred_check_branch
      %86 = sbr.rel (0) target = $region29
    $region28: #{tpu_custom_call.1} parent=1 // pred_region
      %s88 = ssub.s32 256, 256
      %89 = vsyncadd [#allocation6], %s88
      %s91 = sshll.u32 [#allocation9], 4
      %s92 = int_to_ptr.vmem [resolvable:$true] %s91
      %94 = dma.vmem_to_hbm [thread:$0]  %s92, 256, %s2, [#allocation6]
    $region29: #{tpu_custom_call.1} parent=1 // pred_fallthru
      _
    // Predicated region
    $region30: #{tpu_custom_call.1} parent=1 // pred_check
      _
    $region31: #{tpu_custom_call.1} parent=1 // pred_check_branch
      %96 = sbr.rel (0) target = $region33
    $region32: #{tpu_custom_call.1} parent=1 // pred_region
      %97 = dma.done [#allocation6], 256
    $region33: #{tpu_custom_call.1} parent=1 // pred_fallthru
      _
    %98 = vsyncpa [#allocation5], 1
    %99 = vsyncpa [#allocation8], 1
    %100 = vsyncpa [#allocation6], 1

</llo_original>
